<compile_context>
chip_gen: v5e
topology: v5e:2x2
jax: 0.10.0
libtpu: 0.0.40
codegen_flags: <defaults>
</compile_context>

<pallas_src>
import functools

import jax
import jax.numpy as jnp
from jax.experimental import pallas as pl
from jax.experimental.pallas import tpu as pltpu


def _cumulative_kernel(B, S, K, E, OUTW,
                       net_in_ref,    # [K*BS, E+N]  bf16 (k-major rows)
                       in_kmask_ref,  # [K*BS, 1]    f32  (k-major rows)
                       mask_ref,      # [BS, 1]      f32
                       weights_ref,   # [BS, K+1]    f32
                       kmask_ref,     # [BS, K+1]    f32 (pre-squeezed)
                       w1_ref, b1_ref, w2_ref, b2_ref,
                       out_ref):      # [BS, OUTW]   f32 lane-dense slab
    BS = B * S
    half_k = K // 2

    # ---- embed_update MLP: one fused matmul chain over all K*BS rows ----
    x = net_in_ref[...]                                              # bf16 [K*BS, E+N]
    h = jnp.dot(x, w1_ref[...], preferred_element_type=jnp.float32) + b1_ref[...]
    h = jnp.maximum(h, 0.0)                                          # ReLU
    o = jnp.dot(h.astype(jnp.bfloat16), w2_ref[...],
                preferred_element_type=jnp.float32) + b2_ref[...]    # [K*BS, E+2]

    km = in_kmask_ref[...]                                           # [K*BS, 1]
    o_main = o[:, :E + 1] * km                                       # [K*BS, E+1]
    # sigmoid only on the link-weight channel
    lw = jax.nn.sigmoid(o[:, E + 1:E + 2]) * km + 1e-8               # [K*BS, 1]

    # ---- weighted segment sum over the kernel axis ----
    # Rows are k-major, so group i's k-th member is row k*BS + i:
    # K static, sublane-aligned slices accumulated in f32 (no selection matmul).
    num = jnp.zeros((BS, E + 1), jnp.float32)
    den = jnp.zeros((BS, 1), jnp.float32)
    for kk in range(K):
        lw_k = lw[kk * BS:(kk + 1) * BS]
        num = num + lw_k * o_main[kk * BS:(kk + 1) * BS]
        den = den + lw_k
    new = num / den                                                  # [BS, E+1]

    m = mask_ref[...]                                                # [BS, 1]
    new_e = new[:, :E]
    new_w = jax.nn.sigmoid(new[:, E:E + 1])                          # weight channel only
    new_ew = jnp.concatenate([new_e, new_w], axis=1) * m             # [BS, E+1]

    # ---- to_embeds_pairs(keep_own=True) via sublane rolls + accumulate ----
    weights_m = weights_ref[...] * kmask_ref[...]                    # [BS, K+1]
    clw = jnp.sum(weights_m, axis=1, keepdims=True)                  # [BS, 1]

    s_iota = jax.lax.broadcasted_iota(jnp.int32, (BS, 1), 0) % S     # seq position

    ret_num = jnp.zeros((BS, E), jnp.float32)
    top_sum = jnp.zeros((BS, 1), jnp.float32)
    exp_cols = []
    for j in range(K + 1):
        d = j - half_k                                               # window offset
        if d == 0:
            sh = new_ew
        else:
            sh = pltpu.roll(new_ew, shift=(-d) % BS, axis=0)         # XLU sublane roll
        valid = jnp.logical_and(s_iota + d >= 0, s_iota + d < S)     # zero-pad edges
        sh = jnp.where(valid, sh, 0.0)
        exp_j = sh[:, :E]
        top_j = weights_m[:, j:j + 1] * sh[:, E:E + 1] + 1e-7
        ret_num = ret_num + top_j * exp_j
        top_sum = top_sum + top_j
        exp_cols.append(exp_j)

    ret = ret_num * pl.reciprocal(top_sum, approx=True) * m          # [BS, E]

    # ---- one lane-dense packed store ----
    used = E + (K + 1) + 1 + (K + 1) * E
    pieces = [ret, weights_m, clw] + exp_cols
    if OUTW > used:
        pieces.append(jnp.zeros((BS, OUTW - used), jnp.float32))
    out_ref[...] = jnp.concatenate(pieces, axis=1)


def cumulative_layer_forward(embeds, kernel_size, weights, mask, cluster_weights,
                             kmask, in_kmask, links, params):
    del cluster_weights  # unused by the reference forward pass as well
    B, S, E = embeds.shape
    N = links.shape[-1]
    K = kernel_size
    half_k = K // 2
    w1, b1, w2, b2 = params
    H = w1.shape[1]
    BS = B * S

    # --- wrapper-side glue: pure indexing / broadcast / flatten / cast ---
    # k-major row layout so the in-kernel segment sum is K static row-blocks.
    from_emb = jnp.broadcast_to((embeds * mask)[None, :, :, :], (K, B, S, E))
    links_rc = jnp.concatenate([links[:, :, :half_k], links[:, :, -half_k:]], axis=2)
    links_km = jnp.moveaxis(links_rc, 2, 0)                          # [K,B,S,N]
    net_in = jnp.concatenate([from_emb, links_km], axis=3)           # [K,B,S,E+N]
    net_in_flat = net_in.reshape(K * BS, E + N).astype(jnp.bfloat16)
    in_kmask_flat = jnp.moveaxis(in_kmask, 2, 0).reshape(K * BS, 1)
    mask_flat = mask.reshape(BS, 1)
    weights_flat = weights.reshape(BS, K + 1)
    kmask_flat = kmask.reshape(BS, K + 1)
    w1b = w1.astype(jnp.bfloat16)
    w2b = w2.astype(jnp.bfloat16)

    used = E + (K + 1) + 1 + (K + 1) * E
    out_w = 128 * pl.cdiv(used, 128)                                 # lane-dense width

    kernel = functools.partial(_cumulative_kernel, B, S, K, E, out_w)

    in_specs = [
        pl.BlockSpec((K * BS, E + N), lambda i: (0, 0)),
        pl.BlockSpec((K * BS, 1), lambda i: (0, 0)),
        pl.BlockSpec((BS, 1), lambda i: (0, 0)),
        pl.BlockSpec((BS, K + 1), lambda i: (0, 0)),
        pl.BlockSpec((BS, K + 1), lambda i: (0, 0)),
        pl.BlockSpec((E + N, H), lambda i: (0, 0)),
        pl.BlockSpec((1, H), lambda i: (0, 0)),
        pl.BlockSpec((H, E + 2), lambda i: (0, 0)),
        pl.BlockSpec((1, E + 2), lambda i: (0, 0)),
    ]
    out_specs = pl.BlockSpec((BS, out_w), lambda i: (0, 0))

    slab = pl.pallas_call(
        kernel,
        out_shape=jax.ShapeDtypeStruct((BS, out_w), jnp.float32),
        grid_spec=pltpu.PrefetchScalarGridSpec(
            num_scalar_prefetch=0,
            grid=(1,),
            in_specs=in_specs,
            out_specs=out_specs,
        ),
        compiler_params=pltpu.CompilerParams(
            dimension_semantics=("arbitrary",)),
    )(net_in_flat, in_kmask_flat, mask_flat, weights_flat, kmask_flat,
      w1b, b1, w2b, b2)

    # --- split the lane-dense slab back into the module's four outputs ---
    c = 0
    ret = slab[:, c:c + E].reshape(B, S, E); c += E
    weights_m = slab[:, c:c + K + 1].reshape(B, S, K + 1); c += K + 1
    clw = slab[:, c:c + 1].reshape(B, S, 1); c += 1
    expanded = slab[:, c:c + (K + 1) * E].reshape(B, S, K + 1, E)
    return ret, weights_m, expanded, clw


def reference_forward(embeds, kernel_size, weights, mask, kmask, in_kmask, links, params):
    """Pure-JAX (f32) mirror of the PyTorch forward (eval mode) for verification."""
    w1, b1, w2, b2 = params
    B, S, E = embeds.shape
    K = kernel_size
    half_k = K // 2
    from_emb = jnp.broadcast_to((embeds * mask)[:, :, None, :], (B, S, K, E))
    links_rc = jnp.concatenate([links[:, :, :half_k], links[:, :, -half_k:]], axis=2)
    net_in = jnp.concatenate([from_emb, links_rc], axis=3)

    h = jnp.maximum(net_in @ w1 + b1[0], 0.0)
    o = h @ w2 + b2[0]
    o = o.at[..., -1].set(jax.nn.sigmoid(o[..., -1]))
    o = o * in_kmask
    link_w = o[..., -1] + 1e-8
    norm = jnp.sum(link_w, axis=2, keepdims=True)
    uw = (link_w / norm)[..., None]
    updates = jnp.sum(o * uw, axis=2)
    new = updates[..., :-1]
    new = new.at[..., -1].set(jax.nn.sigmoid(new[..., -1]))

    new = new * mask
    padded = jnp.pad(new, ((0, 0), (half_k, half_k), (0, 0)))
    expanded = jnp.stack([padded[:, j:j + S, :] for j in range(K + 1)], axis=2)
    w = expanded[..., -1]
    weights_m = weights * kmask[..., 0]
    clw = jnp.sum(weights_m, axis=2, keepdims=True)
    top = weights_m * w + 1e-7
    ww = top / jnp.sum(top, axis=2, keepdims=True)
    exp_e = expanded[..., :-1]
    ret = jnp.sum(ww[..., None] * exp_e, axis=2) * mask
    return ret, weights_m, exp_e, clw


if __name__ == "__main__":
    B, S, E, N, K, H = 2, 8, 8, 8, 4, 32
    init_std = 0.02

    key = jax.random.PRNGKey(0)
    keys = jax.random.split(key, 10)

    embeds = jax.random.normal(keys[0], (B, S, E), dtype=jnp.float32)
    weights = jax.random.uniform(keys[1], (B, S, K + 1), dtype=jnp.float32,
                                 minval=0.1, maxval=1.0)
    mask = (jax.random.uniform(keys[2], (B, S, 1)) > 0.2).astype(jnp.float32)
    cluster_weights = jax.random.uniform(keys[3], (B, S, K + 1, 1), dtype=jnp.float32)
    kmask = (jax.random.uniform(keys[4], (B, S, K + 1, 1)) > 0.2).astype(jnp.float32)
    in_kmask = (jax.random.uniform(keys[5], (B, S, K, 1)) > 0.2).astype(jnp.float32)
    links = jax.random.normal(keys[6], (B, S, K + 1, N), dtype=jnp.float32)

    # Deterministic parameter init for the synthesized NN (in=E+N, hidden=H, out=E+2)
    w1 = init_std * jax.random.normal(keys[7], (E + N, H), dtype=jnp.float32)
    b1 = jnp.full((1, H), init_std, dtype=jnp.float32)
    w2 = init_std * jax.random.normal(keys[8], (H, E + 2), dtype=jnp.float32)
    b2 = jnp.zeros((1, E + 2), dtype=jnp.float32)
    params = (w1, b1, w2, b2)

    outs = cumulative_layer_forward(embeds, K, weights, mask, cluster_weights,
                                    kmask, in_kmask, links, params)
    outs = jax.block_until_ready(outs)

    refs = reference_forward(embeds, K, weights, mask, kmask, in_kmask, links, params)
    refs = jax.block_until_ready(refs)

    names = ["ret_embeds", "weights", "expanded", "cluster_weights_new"]
    for name, got, exp in zip(names, outs, refs):
        err = float(jnp.max(jnp.abs(got - exp)))
        assert jnp.allclose(got, exp, atol=1e-2, rtol=1e-2), (name, err)

    print("KERNEL_OK")
</pallas_src>

<mosaic_0001>
module attributes {stable_mosaic.version = 11 : i64} {
  func.func @_cumulative_kernel(%arg0: i32, %arg1: memref<64x16xbf16, #tpu.memory_space<vmem>>, %arg2: memref<64x1xf32, #tpu.memory_space<vmem>>, %arg3: memref<16x1xf32, #tpu.memory_space<vmem>>, %arg4: memref<16x5xf32, #tpu.memory_space<vmem>>, %arg5: memref<16x5xf32, #tpu.memory_space<vmem>>, %arg6: memref<16x32xbf16, #tpu.memory_space<vmem>>, %arg7: memref<1x32xf32, #tpu.memory_space<vmem>>, %arg8: memref<32x10xbf16, #tpu.memory_space<vmem>>, %arg9: memref<1x10xf32, #tpu.memory_space<vmem>>, %arg10: memref<16x128xf32, #tpu.memory_space<vmem>>) attributes {dimension_semantics = [#tpu.dimension_semantics<arbitrary>], iteration_bounds = array<i64: 1>, scalar_prefetch = 0 : i64, scratch_operands = 0 : i64, tpu.core_type = #tpu.core_type<tc>, window_params = [{pipeline_mode = #tpu.pipeline_mode<synchronous>, transform_indices = @transform_0, window_bounds = array<i64: 64, 16>}, {pipeline_mode = #tpu.pipeline_mode<synchronous>, transform_indices = @transform_1, window_bounds = array<i64: 64, 1>}, {pipeline_mode = #tpu.pipeline_mode<synchronous>, transform_indices = @transform_2, window_bounds = array<i64: 16, 1>}, {pipeline_mode = #tpu.pipeline_mode<synchronous>, transform_indices = @transform_3, window_bounds = array<i64: 16, 5>}, {pipeline_mode = #tpu.pipeline_mode<synchronous>, transform_indices = @transform_4, window_bounds = array<i64: 16, 5>}, {pipeline_mode = #tpu.pipeline_mode<synchronous>, transform_indices = @transform_5, window_bounds = array<i64: 16, 32>}, {pipeline_mode = #tpu.pipeline_mode<synchronous>, transform_indices = @transform_6, window_bounds = array<i64: 1, 32>}, {pipeline_mode = #tpu.pipeline_mode<synchronous>, transform_indices = @transform_7, window_bounds = array<i64: 32, 10>}, {pipeline_mode = #tpu.pipeline_mode<synchronous>, transform_indices = @transform_8, window_bounds = array<i64: 1, 10>}, {pipeline_mode = #tpu.pipeline_mode<synchronous>, transform_indices = @transform_9, window_bounds = array<i64: 16, 128>}]} {
    %c0 = arith.constant 0 : index
    %c0_0 = arith.constant 0 : index
    %0 = vector.load %arg1[%c0, %c0_0] : memref<64x16xbf16, #tpu.memory_space<vmem>>, vector<64x16xbf16>
    %c0_1 = arith.constant 0 : index
    %c0_2 = arith.constant 0 : index
    %1 = vector.load %arg6[%c0_1, %c0_2] : memref<16x32xbf16, #tpu.memory_space<vmem>>, vector<16x32xbf16>
    %cst = arith.constant dense<0.000000e+00> : vector<64x32xf32>
    %2 = tpu.matmul %0, %1, %cst {dimension_numbers = #tpu.dot_dimension_numbers<[1], [0], [0], [1], [0, 0, 1, 1], [], []>} : vector<64x16xbf16>, vector<16x32xbf16>, vector<64x32xf32> -> vector<64x32xf32>
    %c0_3 = arith.constant 0 : index
    %c0_4 = arith.constant 0 : index
    %3 = vector.load %arg7[%c0_3, %c0_4] : memref<1x32xf32, #tpu.memory_space<vmem>>, vector<1x32xf32>
    %4 = vector.broadcast %3 : vector<1x32xf32> to vector<64x32xf32>
    %5 = arith.addf %2, %4 : vector<64x32xf32>
    %cst_5 = arith.constant 0.000000e+00 : f32
    %6 = vector.broadcast %cst_5 : f32 to vector<64x32xf32>
    %7 = arith.maximumf %5, %6 : vector<64x32xf32>
    %8 = arith.truncf %7 : vector<64x32xf32> to vector<64x32xbf16>
    %c0_6 = arith.constant 0 : index
    %c0_7 = arith.constant 0 : index
    %9 = vector.load %arg8[%c0_6, %c0_7] : memref<32x10xbf16, #tpu.memory_space<vmem>>, vector<32x10xbf16>
    %cst_8 = arith.constant dense<0.000000e+00> : vector<64x10xf32>
    %10 = tpu.matmul %8, %9, %cst_8 {dimension_numbers = #tpu.dot_dimension_numbers<[1], [0], [0], [1], [0, 0, 1, 1], [], []>} : vector<64x32xbf16>, vector<32x10xbf16>, vector<64x10xf32> -> vector<64x10xf32>
    %c0_9 = arith.constant 0 : index
    %c0_10 = arith.constant 0 : index
    %11 = vector.load %arg9[%c0_9, %c0_10] : memref<1x10xf32, #tpu.memory_space<vmem>>, vector<1x10xf32>
    %12 = vector.broadcast %11 : vector<1x10xf32> to vector<64x10xf32>
    %13 = arith.addf %10, %12 : vector<64x10xf32>
    %c0_11 = arith.constant 0 : index
    %c0_12 = arith.constant 0 : index
    %14 = vector.load %arg2[%c0_11, %c0_12] : memref<64x1xf32, #tpu.memory_space<vmem>>, vector<64x1xf32>
    %15 = vector.extract_strided_slice %13 {offsets = [0, 0], sizes = [64, 9], strides = [1, 1]} : vector<64x10xf32> to vector<64x9xf32>
    %16 = vector.broadcast %14 : vector<64x1xf32> to vector<64x9xf32>
    %17 = arith.mulf %15, %16 : vector<64x9xf32>
    %18 = vector.extract_strided_slice %13 {offsets = [0, 9], sizes = [64, 1], strides = [1, 1]} : vector<64x10xf32> to vector<64x1xf32>
    %19 = arith.negf %18 : vector<64x1xf32>
    %20 = math.exp %19 : vector<64x1xf32>
    %cst_13 = arith.constant 1.000000e+00 : f32
    %21 = vector.broadcast %cst_13 : f32 to vector<64x1xf32>
    %22 = arith.addf %21, %20 : vector<64x1xf32>
    %23 = arith.divf %21, %22 : vector<64x1xf32>
    %24 = arith.mulf %23, %14 : vector<64x1xf32>
    %cst_14 = arith.constant 9.99999993E-9 : f32
    %25 = vector.broadcast %cst_14 : f32 to vector<64x1xf32>
    %26 = arith.addf %24, %25 : vector<64x1xf32>
    %cst_15 = arith.constant 0.000000e+00 : f32
    %27 = vector.broadcast %cst_15 : f32 to vector<16x9xf32>
    %cst_16 = arith.constant 0.000000e+00 : f32
    %28 = vector.broadcast %cst_16 : f32 to vector<16x1xf32>
    %29 = vector.extract_strided_slice %26 {offsets = [0, 0], sizes = [16, 1], strides = [1, 1]} : vector<64x1xf32> to vector<16x1xf32>
    %30 = vector.extract_strided_slice %17 {offsets = [0, 0], sizes = [16, 9], strides = [1, 1]} : vector<64x9xf32> to vector<16x9xf32>
    %31 = vector.broadcast %29 : vector<16x1xf32> to vector<16x9xf32>
    %32 = arith.mulf %31, %30 : vector<16x9xf32>
    %33 = arith.addf %27, %32 : vector<16x9xf32>
    %34 = arith.addf %28, %29 : vector<16x1xf32>
    %35 = vector.extract_strided_slice %26 {offsets = [16, 0], sizes = [16, 1], strides = [1, 1]} : vector<64x1xf32> to vector<16x1xf32>
    %36 = vector.extract_strided_slice %17 {offsets = [16, 0], sizes = [16, 9], strides = [1, 1]} : vector<64x9xf32> to vector<16x9xf32>
    %37 = vector.broadcast %35 : vector<16x1xf32> to vector<16x9xf32>
    %38 = arith.mulf %37, %36 : vector<16x9xf32>
    %39 = arith.addf %33, %38 : vector<16x9xf32>
    %40 = arith.addf %34, %35 : vector<16x1xf32>
    %41 = vector.extract_strided_slice %26 {offsets = [32, 0], sizes = [16, 1], strides = [1, 1]} : vector<64x1xf32> to vector<16x1xf32>
    %42 = vector.extract_strided_slice %17 {offsets = [32, 0], sizes = [16, 9], strides = [1, 1]} : vector<64x9xf32> to vector<16x9xf32>
    %43 = vector.broadcast %41 : vector<16x1xf32> to vector<16x9xf32>
    %44 = arith.mulf %43, %42 : vector<16x9xf32>
    %45 = arith.addf %39, %44 : vector<16x9xf32>
    %46 = arith.addf %40, %41 : vector<16x1xf32>
    %47 = vector.extract_strided_slice %26 {offsets = [48, 0], sizes = [16, 1], strides = [1, 1]} : vector<64x1xf32> to vector<16x1xf32>
    %48 = vector.extract_strided_slice %17 {offsets = [48, 0], sizes = [16, 9], strides = [1, 1]} : vector<64x9xf32> to vector<16x9xf32>
    %49 = vector.broadcast %47 : vector<16x1xf32> to vector<16x9xf32>
    %50 = arith.mulf %49, %48 : vector<16x9xf32>
    %51 = arith.addf %45, %50 : vector<16x9xf32>
    %52 = arith.addf %46, %47 : vector<16x1xf32>
    %53 = vector.broadcast %52 : vector<16x1xf32> to vector<16x9xf32>
    %54 = arith.divf %51, %53 : vector<16x9xf32>
    %c0_17 = arith.constant 0 : index
    %c0_18 = arith.constant 0 : index
    %55 = vector.load %arg3[%c0_17, %c0_18] : memref<16x1xf32, #tpu.memory_space<vmem>>, vector<16x1xf32>
    %56 = vector.extract_strided_slice %54 {offsets = [0, 0], sizes = [16, 8], strides = [1, 1]} : vector<16x9xf32> to vector<16x8xf32>
    %57 = vector.extract_strided_slice %54 {offsets = [0, 8], sizes = [16, 1], strides = [1, 1]} : vector<16x9xf32> to vector<16x1xf32>
    %58 = arith.negf %57 : vector<16x1xf32>
    %59 = math.exp %58 : vector<16x1xf32>
    %cst_19 = arith.constant 1.000000e+00 : f32
    %60 = vector.broadcast %cst_19 : f32 to vector<16x1xf32>
    %61 = arith.addf %60, %59 : vector<16x1xf32>
    %62 = arith.divf %60, %61 : vector<16x1xf32>
    %63 = tpu.concatenate %56, %62 in 1 : vector<16x8xf32>, vector<16x1xf32> -> vector<16x9xf32>
    %64 = vector.broadcast %55 : vector<16x1xf32> to vector<16x9xf32>
    %65 = arith.mulf %63, %64 : vector<16x9xf32>
    %c0_20 = arith.constant 0 : index
    %c0_21 = arith.constant 0 : index
    %66 = vector.load %arg4[%c0_20, %c0_21] : memref<16x5xf32, #tpu.memory_space<vmem>>, vector<16x5xf32>
    %c0_22 = arith.constant 0 : index
    %c0_23 = arith.constant 0 : index
    %67 = vector.load %arg5[%c0_22, %c0_23] : memref<16x5xf32, #tpu.memory_space<vmem>>, vector<16x5xf32>
    %68 = arith.mulf %66, %67 : vector<16x5xf32>
    %cst_24 = arith.constant dense<0.000000e+00> : vector<16xf32>
    %69 = vector.multi_reduction <add>, %68, %cst_24 [1] : vector<16x5xf32> to vector<16xf32>
    %70 = vector.shape_cast %69 : vector<16xf32> to vector<16x1xf32>
    %71 = tpu.iota {dimensions = array<i32: 0>} : vector<16x1xi32>
    %c8_i32 = arith.constant 8 : i32
    %c0_i32 = arith.constant 0 : i32
    %72 = arith.cmpi eq, %c8_i32, %c0_i32 : i32
    %c1_i32 = arith.constant 1 : i32
    %73 = arith.select %72, %c1_i32, %c8_i32 : i32
    %74 = vector.broadcast %73 : i32 to vector<16x1xi32>
    %75 = arith.remsi %71, %74 : vector<16x1xi32>
    %c0_i32_25 = arith.constant 0 : i32
    %76 = vector.broadcast %c0_i32_25 : i32 to vector<16x1xi32>
    %77 = arith.cmpi ne, %75, %76 : vector<16x1xi32>
    %c0_i32_26 = arith.constant 0 : i32
    %78 = vector.broadcast %c0_i32_26 : i32 to vector<16x1xi32>
    %79 = arith.cmpi slt, %75, %78 : vector<16x1xi32>
    %c0_i32_27 = arith.constant 0 : i32
    %80 = arith.cmpi slt, %73, %c0_i32_27 : i32
    %81 = vector.broadcast %80 : i1 to vector<16x1xi1>
    %82 = vector.broadcast %81 : vector<16x1xi1> to vector<16x1xi1>
    %83 = arith.xori %79, %82 : vector<16x1xi1>
    %84 = arith.andi %83, %77 : vector<16x1xi1>
    %85 = vector.broadcast %73 : i32 to vector<16x1xi32>
    %86 = arith.addi %75, %85 : vector<16x1xi32>
    %87 = arith.select %84, %86, %75 : vector<16x1xi1>, vector<16x1xi32>
    %cst_28 = arith.constant 0.000000e+00 : f32
    %88 = vector.broadcast %cst_28 : f32 to vector<16x8xf32>
    %cst_29 = arith.constant 0.000000e+00 : f32
    %89 = vector.broadcast %cst_29 : f32 to vector<16x1xf32>
    %c2_i32 = arith.constant 2 : i32
    %90 = tpu.dynamic_rotate %65 by %c2_i32 dim 0 : vector<16x9xf32>, i32 -> vector<16x9xf32>
    %c-2_i32 = arith.constant -2 : i32
    %91 = vector.broadcast %c-2_i32 : i32 to vector<16x1xi32>
    %92 = arith.addi %87, %91 : vector<16x1xi32>
    %c0_i32_30 = arith.constant 0 : i32
    %93 = vector.broadcast %c0_i32_30 : i32 to vector<16x1xi32>
    %94 = arith.cmpi sge, %92, %93 : vector<16x1xi32>
    %c-2_i32_31 = arith.constant -2 : i32
    %95 = vector.broadcast %c-2_i32_31 : i32 to vector<16x1xi32>
    %96 = arith.addi %87, %95 : vector<16x1xi32>
    %c8_i32_32 = arith.constant 8 : i32
    %97 = vector.broadcast %c8_i32_32 : i32 to vector<16x1xi32>
    %98 = arith.cmpi slt, %96, %97 : vector<16x1xi32>
    %99 = arith.andi %94, %98 : vector<16x1xi1>
    %cst_33 = arith.constant 0.000000e+00 : f32
    %100 = vector.shape_cast %99 : vector<16x1xi1> to vector<16x1xi1>
    %101 = vector.broadcast %100 : vector<16x1xi1> to vector<16x9xi1>
    %102 = vector.broadcast %cst_33 : f32 to vector<16x9xf32>
    %103 = arith.select %101, %90, %102 : vector<16x9xi1>, vector<16x9xf32>
    %104 = vector.extract_strided_slice %103 {offsets = [0, 0], sizes = [16, 8], strides = [1, 1]} : vector<16x9xf32> to vector<16x8xf32>
    %105 = vector.extract_strided_slice %68 {offsets = [0, 0], sizes = [16, 1], strides = [1, 1]} : vector<16x5xf32> to vector<16x1xf32>
    %106 = vector.extract_strided_slice %103 {offsets = [0, 8], sizes = [16, 1], strides = [1, 1]} : vector<16x9xf32> to vector<16x1xf32>
    %107 = arith.mulf %105, %106 : vector<16x1xf32>
    %cst_34 = arith.constant 1.000000e-07 : f32
    %108 = vector.broadcast %cst_34 : f32 to vector<16x1xf32>
    %109 = arith.addf %107, %108 : vector<16x1xf32>
    %110 = vector.broadcast %109 : vector<16x1xf32> to vector<16x8xf32>
    %111 = arith.mulf %110, %104 : vector<16x8xf32>
    %112 = arith.addf %88, %111 : vector<16x8xf32>
    %113 = arith.addf %89, %109 : vector<16x1xf32>
    %c1_i32_35 = arith.constant 1 : i32
    %114 = tpu.dynamic_rotate %65 by %c1_i32_35 dim 0 : vector<16x9xf32>, i32 -> vector<16x9xf32>
    %c-1_i32 = arith.constant -1 : i32
    %115 = vector.broadcast %c-1_i32 : i32 to vector<16x1xi32>
    %116 = arith.addi %87, %115 : vector<16x1xi32>
    %c0_i32_36 = arith.constant 0 : i32
    %117 = vector.broadcast %c0_i32_36 : i32 to vector<16x1xi32>
    %118 = arith.cmpi sge, %116, %117 : vector<16x1xi32>
    %c-1_i32_37 = arith.constant -1 : i32
    %119 = vector.broadcast %c-1_i32_37 : i32 to vector<16x1xi32>
    %120 = arith.addi %87, %119 : vector<16x1xi32>
    %c8_i32_38 = arith.constant 8 : i32
    %121 = vector.broadcast %c8_i32_38 : i32 to vector<16x1xi32>
    %122 = arith.cmpi slt, %120, %121 : vector<16x1xi32>
    %123 = arith.andi %118, %122 : vector<16x1xi1>
    %cst_39 = arith.constant 0.000000e+00 : f32
    %124 = vector.shape_cast %123 : vector<16x1xi1> to vector<16x1xi1>
    %125 = vector.broadcast %124 : vector<16x1xi1> to vector<16x9xi1>
    %126 = vector.broadcast %cst_39 : f32 to vector<16x9xf32>
    %127 = arith.select %125, %114, %126 : vector<16x9xi1>, vector<16x9xf32>
    %128 = vector.extract_strided_slice %127 {offsets = [0, 0], sizes = [16, 8], strides = [1, 1]} : vector<16x9xf32> to vector<16x8xf32>
    %129 = vector.extract_strided_slice %68 {offsets = [0, 1], sizes = [16, 1], strides = [1, 1]} : vector<16x5xf32> to vector<16x1xf32>
    %130 = vector.extract_strided_slice %127 {offsets = [0, 8], sizes = [16, 1], strides = [1, 1]} : vector<16x9xf32> to vector<16x1xf32>
    %131 = arith.mulf %129, %130 : vector<16x1xf32>
    %cst_40 = arith.constant 1.000000e-07 : f32
    %132 = vector.broadcast %cst_40 : f32 to vector<16x1xf32>
    %133 = arith.addf %131, %132 : vector<16x1xf32>
    %134 = vector.broadcast %133 : vector<16x1xf32> to vector<16x8xf32>
    %135 = arith.mulf %134, %128 : vector<16x8xf32>
    %136 = arith.addf %112, %135 : vector<16x8xf32>
    %137 = arith.addf %113, %133 : vector<16x1xf32>
    %c0_i32_41 = arith.constant 0 : i32
    %138 = vector.broadcast %c0_i32_41 : i32 to vector<16x1xi32>
    %139 = arith.addi %87, %138 : vector<16x1xi32>
    %c0_i32_42 = arith.constant 0 : i32
    %140 = vector.broadcast %c0_i32_42 : i32 to vector<16x1xi32>
    %141 = arith.cmpi sge, %139, %140 : vector<16x1xi32>
    %c0_i32_43 = arith.constant 0 : i32
    %142 = vector.broadcast %c0_i32_43 : i32 to vector<16x1xi32>
    %143 = arith.addi %87, %142 : vector<16x1xi32>
    %c8_i32_44 = arith.constant 8 : i32
    %144 = vector.broadcast %c8_i32_44 : i32 to vector<16x1xi32>
    %145 = arith.cmpi slt, %143, %144 : vector<16x1xi32>
    %146 = arith.andi %141, %145 : vector<16x1xi1>
    %cst_45 = arith.constant 0.000000e+00 : f32
    %147 = vector.shape_cast %146 : vector<16x1xi1> to vector<16x1xi1>
    %148 = vector.broadcast %147 : vector<16x1xi1> to vector<16x9xi1>
    %149 = vector.broadcast %cst_45 : f32 to vector<16x9xf32>
    %150 = arith.select %148, %65, %149 : vector<16x9xi1>, vector<16x9xf32>
    %151 = vector.extract_strided_slice %150 {offsets = [0, 0], sizes = [16, 8], strides = [1, 1]} : vector<16x9xf32> to vector<16x8xf32>
    %152 = vector.extract_strided_slice %68 {offsets = [0, 2], sizes = [16, 1], strides = [1, 1]} : vector<16x5xf32> to vector<16x1xf32>
    %153 = vector.extract_strided_slice %150 {offsets = [0, 8], sizes = [16, 1], strides = [1, 1]} : vector<16x9xf32> to vector<16x1xf32>
    %154 = arith.mulf %152, %153 : vector<16x1xf32>
    %cst_46 = arith.constant 1.000000e-07 : f32
    %155 = vector.broadcast %cst_46 : f32 to vector<16x1xf32>
    %156 = arith.addf %154, %155 : vector<16x1xf32>
    %157 = vector.broadcast %156 : vector<16x1xf32> to vector<16x8xf32>
    %158 = arith.mulf %157, %151 : vector<16x8xf32>
    %159 = arith.addf %136, %158 : vector<16x8xf32>
    %160 = arith.addf %137, %156 : vector<16x1xf32>
    %c15_i32 = arith.constant 15 : i32
    %161 = tpu.dynamic_rotate %65 by %c15_i32 dim 0 : vector<16x9xf32>, i32 -> vector<16x9xf32>
    %c1_i32_47 = arith.constant 1 : i32
    %162 = vector.broadcast %c1_i32_47 : i32 to vector<16x1xi32>
    %163 = arith.addi %87, %162 : vector<16x1xi32>
    %c0_i32_48 = arith.constant 0 : i32
    %164 = vector.broadcast %c0_i32_48 : i32 to vector<16x1xi32>
    %165 = arith.cmpi sge, %163, %164 : vector<16x1xi32>
    %c1_i32_49 = arith.constant 1 : i32
    %166 = vector.broadcast %c1_i32_49 : i32 to vector<16x1xi32>
    %167 = arith.addi %87, %166 : vector<16x1xi32>
    %c8_i32_50 = arith.constant 8 : i32
    %168 = vector.broadcast %c8_i32_50 : i32 to vector<16x1xi32>
    %169 = arith.cmpi slt, %167, %168 : vector<16x1xi32>
    %170 = arith.andi %165, %169 : vector<16x1xi1>
    %cst_51 = arith.constant 0.000000e+00 : f32
    %171 = vector.shape_cast %170 : vector<16x1xi1> to vector<16x1xi1>
    %172 = vector.broadcast %171 : vector<16x1xi1> to vector<16x9xi1>
    %173 = vector.broadcast %cst_51 : f32 to vector<16x9xf32>
    %174 = arith.select %172, %161, %173 : vector<16x9xi1>, vector<16x9xf32>
    %175 = vector.extract_strided_slice %174 {offsets = [0, 0], sizes = [16, 8], strides = [1, 1]} : vector<16x9xf32> to vector<16x8xf32>
    %176 = vector.extract_strided_slice %68 {offsets = [0, 3], sizes = [16, 1], strides = [1, 1]} : vector<16x5xf32> to vector<16x1xf32>
    %177 = vector.extract_strided_slice %174 {offsets = [0, 8], sizes = [16, 1], strides = [1, 1]} : vector<16x9xf32> to vector<16x1xf32>
    %178 = arith.mulf %176, %177 : vector<16x1xf32>
    %cst_52 = arith.constant 1.000000e-07 : f32
    %179 = vector.broadcast %cst_52 : f32 to vector<16x1xf32>
    %180 = arith.addf %178, %179 : vector<16x1xf32>
    %181 = vector.broadcast %180 : vector<16x1xf32> to vector<16x8xf32>
    %182 = arith.mulf %181, %175 : vector<16x8xf32>
    %183 = arith.addf %159, %182 : vector<16x8xf32>
    %184 = arith.addf %160, %180 : vector<16x1xf32>
    %c14_i32 = arith.constant 14 : i32
    %185 = tpu.dynamic_rotate %65 by %c14_i32 dim 0 : vector<16x9xf32>, i32 -> vector<16x9xf32>
    %c2_i32_53 = arith.constant 2 : i32
    %186 = vector.broadcast %c2_i32_53 : i32 to vector<16x1xi32>
    %187 = arith.addi %87, %186 : vector<16x1xi32>
    %c0_i32_54 = arith.constant 0 : i32
    %188 = vector.broadcast %c0_i32_54 : i32 to vector<16x1xi32>
    %189 = arith.cmpi sge, %187, %188 : vector<16x1xi32>
    %c2_i32_55 = arith.constant 2 : i32
    %190 = vector.broadcast %c2_i32_55 : i32 to vector<16x1xi32>
    %191 = arith.addi %87, %190 : vector<16x1xi32>
    %c8_i32_56 = arith.constant 8 : i32
    %192 = vector.broadcast %c8_i32_56 : i32 to vector<16x1xi32>
    %193 = arith.cmpi slt, %191, %192 : vector<16x1xi32>
    %194 = arith.andi %189, %193 : vector<16x1xi1>
    %cst_57 = arith.constant 0.000000e+00 : f32
    %195 = vector.shape_cast %194 : vector<16x1xi1> to vector<16x1xi1>
    %196 = vector.broadcast %195 : vector<16x1xi1> to vector<16x9xi1>
    %197 = vector.broadcast %cst_57 : f32 to vector<16x9xf32>
    %198 = arith.select %196, %185, %197 : vector<16x9xi1>, vector<16x9xf32>
    %199 = vector.extract_strided_slice %198 {offsets = [0, 0], sizes = [16, 8], strides = [1, 1]} : vector<16x9xf32> to vector<16x8xf32>
    %200 = vector.extract_strided_slice %68 {offsets = [0, 4], sizes = [16, 1], strides = [1, 1]} : vector<16x5xf32> to vector<16x1xf32>
    %201 = vector.extract_strided_slice %198 {offsets = [0, 8], sizes = [16, 1], strides = [1, 1]} : vector<16x9xf32> to vector<16x1xf32>
    %202 = arith.mulf %200, %201 : vector<16x1xf32>
    %cst_58 = arith.constant 1.000000e-07 : f32
    %203 = vector.broadcast %cst_58 : f32 to vector<16x1xf32>
    %204 = arith.addf %202, %203 : vector<16x1xf32>
    %205 = vector.broadcast %204 : vector<16x1xf32> to vector<16x8xf32>
    %206 = arith.mulf %205, %199 : vector<16x8xf32>
    %207 = arith.addf %183, %206 : vector<16x8xf32>
    %208 = arith.addf %184, %204 : vector<16x1xf32>
    %209 = tpu.reciprocal %208 {approx = true} : vector<16x1xf32> -> vector<16x1xf32>
    %210 = vector.broadcast %209 : vector<16x1xf32> to vector<16x8xf32>
    %211 = arith.mulf %207, %210 : vector<16x8xf32>
    %212 = vector.broadcast %55 : vector<16x1xf32> to vector<16x8xf32>
    %213 = arith.mulf %211, %212 : vector<16x8xf32>
    %cst_59 = arith.constant 0.000000e+00 : f32
    %214 = vector.broadcast %cst_59 : f32 to vector<16x74xf32>
    %215 = tpu.concatenate %213, %68, %70, %104, %128, %151, %175, %199, %214 in 1 : vector<16x8xf32>, vector<16x5xf32>, vector<16x1xf32>, vector<16x8xf32>, vector<16x8xf32>, vector<16x8xf32>, vector<16x8xf32>, vector<16x8xf32>, vector<16x74xf32> -> vector<16x128xf32>
    %c0_60 = arith.constant 0 : index
    %c0_61 = arith.constant 0 : index
    %216 = vector.load %arg10[%c0_60, %c0_61] : memref<16x128xf32, #tpu.memory_space<vmem>>, vector<16x128xf32>
    tpu.vector_store %arg10[%c0_60, %c0_61], %215 {strides = array<i32>} : memref<16x128xf32, #tpu.memory_space<vmem>>, vector<16x128xf32>,
    return
  }
  func.func @transform_0(%arg0: i32) -> (i32, i32) {
    %c0_i32 = arith.constant 0 : i32
    %c0_i32_0 = arith.constant 0 : i32
    %c0_i32_1 = arith.constant 0 : i32
    return %c0_i32, %c0_i32_0 : i32, i32
  }
  func.func @transform_1(%arg0: i32) -> (i32, i32) {
    %c0_i32 = arith.constant 0 : i32
    %c0_i32_0 = arith.constant 0 : i32
    %c0_i32_1 = arith.constant 0 : i32
    return %c0_i32, %c0_i32_0 : i32, i32
  }
  func.func @transform_2(%arg0: i32) -> (i32, i32) {
    %c0_i32 = arith.constant 0 : i32
    %c0_i32_0 = arith.constant 0 : i32
    %c0_i32_1 = arith.constant 0 : i32
    return %c0_i32, %c0_i32_0 : i32, i32
  }
  func.func @transform_3(%arg0: i32) -> (i32, i32) {
    %c0_i32 = arith.constant 0 : i32
    %c0_i32_0 = arith.constant 0 : i32
    %c0_i32_1 = arith.constant 0 : i32
    return %c0_i32, %c0_i32_0 : i32, i32
  }
  func.func @transform_4(%arg0: i32) -> (i32, i32) {
    %c0_i32 = arith.constant 0 : i32
    %c0_i32_0 = arith.constant 0 : i32
    %c0_i32_1 = arith.constant 0 : i32
    return %c0_i32, %c0_i32_0 : i32, i32
  }
  func.func @transform_5(%arg0: i32) -> (i32, i32) {
    %c0_i32 = arith.constant 0 : i32
    %c0_i32_0 = arith.constant 0 : i32
    %c0_i32_1 = arith.constant 0 : i32
    return %c0_i32, %c0_i32_0 : i32, i32
  }
  func.func @transform_6(%arg0: i32) -> (i32, i32) {
    %c0_i32 = arith.constant 0 : i32
    %c0_i32_0 = arith.constant 0 : i32
    %c0_i32_1 = arith.constant 0 : i32
    return %c0_i32, %c0_i32_0 : i32, i32
  }
  func.func @transform_7(%arg0: i32) -> (i32, i32) {
    %c0_i32 = arith.constant 0 : i32
    %c0_i32_0 = arith.constant 0 : i32
    %c0_i32_1 = arith.constant 0 : i32
    return %c0_i32, %c0_i32_0 : i32, i32
  }
  func.func @transform_8(%arg0: i32) -> (i32, i32) {
    %c0_i32 = arith.constant 0 : i32
    %c0_i32_0 = arith.constant 0 : i32
    %c0_i32_1 = arith.constant 0 : i32
    return %c0_i32, %c0_i32_0 : i32, i32
  }
  func.func @transform_9(%arg0: i32) -> (i32, i32) {
    %c0_i32 = arith.constant 0 : i32
    %c0_i32_0 = arith.constant 0 : i32
    %c0_i32_1 = arith.constant 0 : i32
    return %c0_i32, %c0_i32_0 : i32, i32
  }
}

</mosaic_0001>

<llo_original>
// kernel: tpu_custom_call.1
$region0: #{tpu_custom_call.1}
  #allocation0 [shape = 'u32[]', space=smem, size = 0x4, offset = 0x4, fixed_abs, tag = 'smem constant byte address 0x4 - core index']
  #allocation1 [shape = 'u32[72,128]{1,0:T(1,128)}', space=vmem, size = 0x9000, scoped, tag = 'internal scratch']
  %s0 = inlined_call_operand.vmem [shape: bf16[64,16], index: 0, kind: input, shape index: {}]
  %s1 = inlined_call_operand.vmem [shape: f32[64,1], index: 1, kind: input, shape index: {}]
  %s2 = inlined_call_operand.vmem [shape: f32[16,1], index: 2, kind: input, shape index: {}]
  %s3 = inlined_call_operand.vmem [shape: f32[16,5], index: 3, kind: input, shape index: {}]
  %s4 = inlined_call_operand.vmem [shape: f32[16,5], index: 4, kind: input, shape index: {}]
  %s5 = inlined_call_operand.vmem [shape: bf16[16,32], index: 5, kind: input, shape index: {}]
  %s6 = inlined_call_operand.vmem [shape: f32[1,32], index: 6, kind: input, shape index: {}]
  %s7 = inlined_call_operand.vmem [shape: bf16[32,10], index: 7, kind: input, shape index: {}]
  %s8 = inlined_call_operand.vmem [shape: f32[1,10], index: 8, kind: input, shape index: {}]
  %s9 = inlined_call_operand.hbm [shape: f32[16,128], index: 9, kind: output, shape index: {}]
  %s10 = sld [smem:[#allocation0]]
  $region46: #{tpu_custom_call.1} parent=0
    _
  %s12 = ssub.s32 1, %s10
  %s13 = scalar_select 0, %s12, %s10
  $region1: #{tpu_custom_call.1} parent=0
    #allocation2 [shape = 'u8[8192]{0}', space=vmem, size = 0x2000, scoped, tag = 'output window, operand 0, single buffered']
    #allocation3 [shape = 's32[1]{0}', space=sflag, size = 0x4, scoped, tag = 'scoped memory for tpu_custom_call.1']
    %14 = vsyncpa [#allocation3], 0
    // Predicated region
    $region2: #{tpu_custom_call.1} parent=1 // pred_check
      _
    $region3: #{tpu_custom_call.1} parent=1 // pred_check_branch
      %16 = sbr.rel (0) target = $region5
    $region4: #{tpu_custom_call.1} parent=1 // pred_region
      _
    $region5: #{tpu_custom_call.1} parent=1 // pred_fallthru
      _
    // Predicated region
    $region6: #{tpu_custom_call.1} parent=1 // pred_check
      _
    $region7: #{tpu_custom_call.1} parent=1 // pred_check_branch
      %18 = sbr.rel (0) target = $region9
    $region8: #{tpu_custom_call.1} parent=1 // pred_region
      _
    $region9: #{tpu_custom_call.1} parent=1 // pred_fallthru
      _
    // Predicated region
    $region10: #{tpu_custom_call.1} parent=1 // pred_check
      _
    $region11: #{tpu_custom_call.1} parent=1 // pred_check_branch
      %20 = sbr.rel (0) target = $region13
    $region12: #{tpu_custom_call.1} parent=1 // pred_region
      _
    $region13: #{tpu_custom_call.1} parent=1 // pred_fallthru
      _
    // Predicated region
    $region14: #{tpu_custom_call.1} parent=1 // pred_check
      _
    $region15: #{tpu_custom_call.1} parent=1 // pred_check_branch
      %22 = sbr.rel (0) target = $region17
    $region16: #{tpu_custom_call.1} parent=1 // pred_region
      _
    $region17: #{tpu_custom_call.1} parent=1 // pred_fallthru
      _
    // Predicated region
    $region18: #{tpu_custom_call.1} parent=1 // pred_check
      _
    $region19: #{tpu_custom_call.1} parent=1 // pred_check_branch
      %24 = sbr.rel (0) target = $region21
    $region20: #{tpu_custom_call.1} parent=1 // pred_region
      _
    $region21: #{tpu_custom_call.1} parent=1 // pred_fallthru
      _
    // Predicated region
    $region22: #{tpu_custom_call.1} parent=1 // pred_check
      _
    $region23: #{tpu_custom_call.1} parent=1 // pred_check_branch
      %26 = sbr.rel (0) target = $region25
    $region24: #{tpu_custom_call.1} parent=1 // pred_region
      _
    $region25: #{tpu_custom_call.1} parent=1 // pred_fallthru
      _
    // Predicated region
    $region26: #{tpu_custom_call.1} parent=1 // pred_check
      _
    $region27: #{tpu_custom_call.1} parent=1 // pred_check_branch
      %28 = sbr.rel (0) target = $region29
    $region28: #{tpu_custom_call.1} parent=1 // pred_region
      _
    $region29: #{tpu_custom_call.1} parent=1 // pred_fallthru
      _
    // Predicated region
    $region30: #{tpu_custom_call.1} parent=1 // pred_check
      _
    $region31: #{tpu_custom_call.1} parent=1 // pred_check_branch
      %30 = sbr.rel (0) target = $region33
    $region32: #{tpu_custom_call.1} parent=1 // pred_region
      _
    $region33: #{tpu_custom_call.1} parent=1 // pred_fallthru
      _
    // Predicated region
    $region34: #{tpu_custom_call.1} parent=1 // pred_check
      _
    $region35: #{tpu_custom_call.1} parent=1 // pred_check_branch
      %32 = sbr.rel (0) target = $region37
    $region36: #{tpu_custom_call.1} parent=1 // pred_region
      _
    $region37: #{tpu_custom_call.1} parent=1 // pred_fallthru
      _
    %v34 = vld [vmem:[%s0] sm:$0xf]
    %v35 = vld [vmem:[%s0 + $0x4] sm:$0xf]
    %v36 = vld [vmem:[%s0 + $0x8] sm:$0xf]
    %v37 = vld [vmem:[%s0 + $0xc] sm:$0xf]
    %v38 = vld [vmem:[%s0 + $0x10] sm:$0xf]
    %v39 = vld [vmem:[%s0 + $0x14] sm:$0xf]
    %v40 = vld [vmem:[%s0 + $0x18] sm:$0xf]
    %v41 = vld [vmem:[%s0 + $0x1c] sm:$0xf]
    %v42 = vld [vmem:[%s5] sm:$0xf]
    %v43 = vld [vmem:[%s5 + $0x4] sm:$0xf]
    %v44 = vld [vmem:[%s6] sm:$0x1]
    %v46 = vperm.slane %v44, 0
    %v56 = vunpack.c.l.b16 %v34
    %v57 = vunpack.c.l.b16 %v35
    %v58 = vunpack.c.l.b16 %v36
    %v59 = vunpack.c.l.b16 %v37
    %v60 = vunpack.c.l.b16 %v38
    %v61 = vunpack.c.l.b16 %v39
    %v62 = vunpack.c.l.b16 %v40
    %v63 = vunpack.c.l.b16 %v41
    %v64 = vpack.c.b16 %v57, %v56
    %v65 = vpack.c.b16 %v59, %v58
    %v66 = vpack.c.b16 %v61, %v60
    %v67 = vpack.c.b16 %v63, %v62
    %v70 = vunpack.c.l.b16 %v42
    %v71 = vunpack.c.l.b16 %v43
    %v72 = vpack.c.b16 %v71, %v70
    %vm74 = vcmask 130048
    %v76 = vsel %vm74, %v64, 0
    %v79 = vsel %vm74, %v65, 0
    %v82 = vsel %vm74, %v66, 0
    %v85 = vsel %vm74, %v67, 0
    %87 = vmatpush.bf16.msra.mxu0 0
    %88 = vmatpush.bf16.msra.mxu0 0
    %89 = vmatpush.bf16.msra.mxu0 0
    %90 = vmatpush.bf16.msra.mxu0 0
    %91 = vmatpush.bf16.msra.mxu0 0
    %92 = vmatpush.bf16.msra.mxu0 0
    %93 = vmatpush.bf16.msra.mxu0 0
    %94 = vmatpush.bf16.msra.mxu0 %v72
    %95 = vmatmul.bf16.gmra.mxu0 %v76
    %v96 = vpop.f32.mrf.mxu0
    %v97 = vadd.f32 %v46, %v96
    %v98 = vpop.f32.mrf.mxu0
    %v99 = vadd.f32 %v46, %v98
    %100 = vmatmul.bf16.gmra.mxu0 %v79
    %v101 = vpop.f32.mrf.mxu0
    %v102 = vadd.f32 %v46, %v101
    %v103 = vpop.f32.mrf.mxu0
    %v104 = vadd.f32 %v46, %v103
    %105 = vmatmul.bf16.gmra.mxu0 %v82
    %v106 = vpop.f32.mrf.mxu0
    %v107 = vadd.f32 %v46, %v106
    %v108 = vpop.f32.mrf.mxu0
    %v109 = vadd.f32 %v46, %v108
    %110 = vmatmul.bf16.gmra.mxu0 %v85
    %v111 = vpop.f32.mrf.mxu0
    %v112 = vadd.f32 %v46, %v111
    %v113 = vpop.f32.mrf.mxu0
    %v114 = vadd.f32 %v46, %v113
    %115 = vdwg.mxu0
    %v116 = vmax.f32 %v97, 0.0
    %v117 = vmax.f32 %v99, 0.0
    %v118 = vmax.f32 %v102, 0.0
    %v119 = vmax.f32 %v104, 0.0
    %v120 = vmax.f32 %v107, 0.0
    %v121 = vmax.f32 %v109, 0.0
    %v122 = vmax.f32 %v112, 0.0
    %v123 = vmax.f32 %v114, 0.0
    %v124 = vpack.c.bf16 %v117, %v116
    %v125 = vpack.c.bf16 %v119, %v118
    %v126 = vpack.c.bf16 %v121, %v120
    %v127 = vpack.c.bf16 %v123, %v122
    %v128 = vld [vmem:[%s7] sm:$0xf]
    %v129 = vld [vmem:[%s7 + $0x4] sm:$0xf]
    %v130 = vld [vmem:[%s7 + $0x8] sm:$0xf]
    %v131 = vld [vmem:[%s7 + $0xc] sm:$0xf]
    %v132 = vld [vmem:[%s8] sm:$0x1]
    %v134 = vperm.slane %v132, 0
    %v140 = vunpack.c.l.b16 %v128
    %v141 = vunpack.c.l.b16 %v129
    %v142 = vunpack.c.l.b16 %v130
    %v143 = vunpack.c.l.b16 %v131
    %v144 = vpack.c.b16 %v141, %v140
    %v145 = vpack.c.b16 %v143, %v142
    %vm148 = vcmask 261120
    %v150 = vsel %vm148, %v124, 0
    %v153 = vsel %vm148, %v125, 0
    %v156 = vsel %vm148, %v126, 0
    %v159 = vsel %vm148, %v127, 0
    %161 = vmatpush.bf16.msra.mxu0 0
    %162 = vmatpush.bf16.msra.mxu0 0
    %163 = vmatpush.bf16.msra.mxu0 0
    %164 = vmatpush.bf16.msra.mxu0 0
    %165 = vmatpush.bf16.msra.mxu0 0
    %166 = vmatpush.bf16.msra.mxu0 0
    %167 = vmatpush.bf16.msra.mxu0 %v145
    %168 = vmatpush.bf16.msra.mxu0 %v144
    %169 = vmatmul.bf16.gmra.mxu0 %v150
    %v170 = vpop.f32.mrf.mxu0
    %v171 = vadd.f32 %v134, %v170
    %v172 = vpop.f32.mrf.mxu0
    %v173 = vadd.f32 %v134, %v172
    %174 = vmatmul.bf16.gmra.mxu0 %v153
    %v175 = vpop.f32.mrf.mxu0
    %v176 = vadd.f32 %v134, %v175
    %v177 = vpop.f32.mrf.mxu0
    %v178 = vadd.f32 %v134, %v177
    %179 = vmatmul.bf16.gmra.mxu0 %v156
    %v180 = vpop.f32.mrf.mxu0
    %v181 = vadd.f32 %v134, %v180
    %v182 = vpop.f32.mrf.mxu0
    %v183 = vadd.f32 %v134, %v182
    %184 = vmatmul.bf16.gmra.mxu0 %v159
    %v185 = vpop.f32.mrf.mxu0
    %v186 = vadd.f32 %v134, %v185
    %v187 = vpop.f32.mrf.mxu0
    %v188 = vadd.f32 %v134, %v187
    %189 = vdwg.mxu0
    %v190 = vld [vmem:[%s1] sm:$0xff]
    %v191 = vld [vmem:[%s1 + $0x8] sm:$0xff]
    %v192 = vld [vmem:[%s1 + $0x10] sm:$0xff]
    %v193 = vld [vmem:[%s1 + $0x18] sm:$0xff]
    %v194 = vld [vmem:[%s1 + $0x20] sm:$0xff]
    %v195 = vld [vmem:[%s1 + $0x28] sm:$0xff]
    %v196 = vld [vmem:[%s1 + $0x30] sm:$0xff]
    %v197 = vld [vmem:[%s1 + $0x38] sm:$0xff]
    %199 = vset.pattern.permute.xlu0 0
    %200 = vperm.xlu0 %199, %v190
    %v201 = vpop.permute.xlu0 %200
    %204 = vset.pattern.permute.xlu0 0
    %205 = vperm.xlu0 %204, %v191
    %v206 = vpop.permute.xlu0 %205
    %209 = vset.pattern.permute.xlu0 0
    %210 = vperm.xlu0 %209, %v192
    %v211 = vpop.permute.xlu0 %210
    %214 = vset.pattern.permute.xlu0 0
    %215 = vperm.xlu0 %214, %v193
    %v216 = vpop.permute.xlu0 %215
    %219 = vset.pattern.permute.xlu0 0
    %220 = vperm.xlu0 %219, %v194
    %v221 = vpop.permute.xlu0 %220
    %224 = vset.pattern.permute.xlu0 0
    %225 = vperm.xlu0 %224, %v195
    %v226 = vpop.permute.xlu0 %225
    %229 = vset.pattern.permute.xlu0 0
    %230 = vperm.xlu0 %229, %v196
    %v231 = vpop.permute.xlu0 %230
    %234 = vset.pattern.permute.xlu0 0
    %235 = vperm.xlu0 %234, %v197
    %v236 = vpop.permute.xlu0 %235
    %v238 = vmul.f32 %v171, %v201
    %v239 = vmul.f32 %v173, %v206
    %v240 = vmul.f32 %v176, %v211
    %v241 = vmul.f32 %v178, %v216
    %v242 = vmul.f32 %v181, %v221
    %v243 = vmul.f32 %v183, %v226
    %v244 = vmul.f32 %v186, %v231
    %v245 = vmul.f32 %v188, %v236
    %v246 = vxor.u32 %v171, 2147483648
    %v247 = vxor.u32 %v173, 2147483648
    %v248 = vxor.u32 %v176, 2147483648
    %v249 = vxor.u32 %v178, 2147483648
    %v250 = vxor.u32 %v181, 2147483648
    %v251 = vxor.u32 %v183, 2147483648
    %v252 = vxor.u32 %v186, 2147483648
    %v253 = vxor.u32 %v188, 2147483648
    %v254 = vmul.f32 %v246, 1.442695
    %v255 = vpow.pop %v254
    %v256 = vmul.f32 %v247, 1.442695
    %v257 = vpow.pop %v256
    %v258 = vmul.f32 %v248, 1.442695
    %v259 = vpow.pop %v258
    %v260 = vmul.f32 %v249, 1.442695
    %v261 = vpow.pop %v260
    %v262 = vmul.f32 %v250, 1.442695
    %v263 = vpow.pop %v262
    %v264 = vmul.f32 %v251, 1.442695
    %v265 = vpow.pop %v264
    %v266 = vmul.f32 %v252, 1.442695
    %v267 = vpow.pop %v266
    %v268 = vmul.f32 %v253, 1.442695
    %v269 = vpow.pop %v268
    %v270 = vadd.f32 %v255, 1.0
    %v271 = vadd.f32 %v257, 1.0
    %v272 = vadd.f32 %v259, 1.0
    %v273 = vadd.f32 %v261, 1.0
    %v274 = vadd.f32 %v263, 1.0
    %v275 = vadd.f32 %v265, 1.0
    %v276 = vadd.f32 %v267, 1.0
    %v277 = vadd.f32 %v269, 1.0
    %v278 = vrcp.pop %v270
    %v279 = vmul.f32 %v270, %v278
    %v280 = vsub.f32 1.0, %v279
    %v281 = vmul.f32 %v278, %v280
    %v282 = vadd.f32 %v278, %v281
    %vm283 = vweird.f32 %v270
    %vm284 = vweird.f32 %v278
    %vm285 = vmor %vm283, %vm284
    %v286 = vsel %vm285, %v278, %v282
    %v287 = vand.u32 2147483647, %v270
    %vm288 = vcmp.eq.f32.partialorder %v287, 8.507059e+37
    %v289 = vand.u32 %v270, 2147483648
    %v290 = vor.u32 1.1754944e-38, %v289
    %v291 = vsel %vm288, %v290, %v286
    %v292 = vmul.f32 1.0, %v291
    %v293 = vrcp.pop %v271
    %v294 = vmul.f32 %v271, %v293
    %v295 = vsub.f32 1.0, %v294
    %v296 = vmul.f32 %v293, %v295
    %v297 = vadd.f32 %v293, %v296
    %vm298 = vweird.f32 %v271
    %vm299 = vweird.f32 %v293
    %vm300 = vmor %vm298, %vm299
    %v301 = vsel %vm300, %v293, %v297
    %v302 = vand.u32 2147483647, %v271
    %vm303 = vcmp.eq.f32.partialorder %v302, 8.507059e+37
    %v304 = vand.u32 %v271, 2147483648
    %v305 = vor.u32 1.1754944e-38, %v304
    %v306 = vsel %vm303, %v305, %v301
    %v307 = vmul.f32 1.0, %v306
    %v308 = vrcp.pop %v272
    %v309 = vmul.f32 %v272, %v308
    %v310 = vsub.f32 1.0, %v309
    %v311 = vmul.f32 %v308, %v310
    %v312 = vadd.f32 %v308, %v311
    %vm313 = vweird.f32 %v272
    %vm314 = vweird.f32 %v308
    %vm315 = vmor %vm313, %vm314
    %v316 = vsel %vm315, %v308, %v312
    %v317 = vand.u32 2147483647, %v272
    %vm318 = vcmp.eq.f32.partialorder %v317, 8.507059e+37
    %v319 = vand.u32 %v272, 2147483648
    %v320 = vor.u32 1.1754944e-38, %v319
    %v321 = vsel %vm318, %v320, %v316
    %v322 = vmul.f32 1.0, %v321
    %v323 = vrcp.pop %v273
    %v324 = vmul.f32 %v273, %v323
    %v325 = vsub.f32 1.0, %v324
    %v326 = vmul.f32 %v323, %v325
    %v327 = vadd.f32 %v323, %v326
    %vm328 = vweird.f32 %v273
    %vm329 = vweird.f32 %v323
    %vm330 = vmor %vm328, %vm329
    %v331 = vsel %vm330, %v323, %v327
    %v332 = vand.u32 2147483647, %v273
    %vm333 = vcmp.eq.f32.partialorder %v332, 8.507059e+37
    %v334 = vand.u32 %v273, 2147483648
    %v335 = vor.u32 1.1754944e-38, %v334
    %v336 = vsel %vm333, %v335, %v331
    %v337 = vmul.f32 1.0, %v336
    %v338 = vrcp.pop %v274
    %v339 = vmul.f32 %v274, %v338
    %v340 = vsub.f32 1.0, %v339
    %v341 = vmul.f32 %v338, %v340
    %v342 = vadd.f32 %v338, %v341
    %vm343 = vweird.f32 %v274
    %vm344 = vweird.f32 %v338
    %vm345 = vmor %vm343, %vm344
    %v346 = vsel %vm345, %v338, %v342
    %v347 = vand.u32 2147483647, %v274
    %vm348 = vcmp.eq.f32.partialorder %v347, 8.507059e+37
    %v349 = vand.u32 %v274, 2147483648
    %v350 = vor.u32 1.1754944e-38, %v349
    %v351 = vsel %vm348, %v350, %v346
    %v352 = vmul.f32 1.0, %v351
    %v353 = vrcp.pop %v275
    %v354 = vmul.f32 %v275, %v353
    %v355 = vsub.f32 1.0, %v354
    %v356 = vmul.f32 %v353, %v355
    %v357 = vadd.f32 %v353, %v356
    %vm358 = vweird.f32 %v275
    %vm359 = vweird.f32 %v353
    %vm360 = vmor %vm358, %vm359
    %v361 = vsel %vm360, %v353, %v357
    %v362 = vand.u32 2147483647, %v275
    %vm363 = vcmp.eq.f32.partialorder %v362, 8.507059e+37
    %v364 = vand.u32 %v275, 2147483648
    %v365 = vor.u32 1.1754944e-38, %v364
    %v366 = vsel %vm363, %v365, %v361
    %v367 = vmul.f32 1.0, %v366
    %v368 = vrcp.pop %v276
    %v369 = vmul.f32 %v276, %v368
    %v370 = vsub.f32 1.0, %v369
    %v371 = vmul.f32 %v368, %v370
    %v372 = vadd.f32 %v368, %v371
    %vm373 = vweird.f32 %v276
    %vm374 = vweird.f32 %v368
    %vm375 = vmor %vm373, %vm374
    %v376 = vsel %vm375, %v368, %v372
    %v377 = vand.u32 2147483647, %v276
    %vm378 = vcmp.eq.f32.partialorder %v377, 8.507059e+37
    %v379 = vand.u32 %v276, 2147483648
    %v380 = vor.u32 1.1754944e-38, %v379
    %v381 = vsel %vm378, %v380, %v376
    %v382 = vmul.f32 1.0, %v381
    %v383 = vrcp.pop %v277
    %v384 = vmul.f32 %v277, %v383
    %v385 = vsub.f32 1.0, %v384
    %v386 = vmul.f32 %v383, %v385
    %v387 = vadd.f32 %v383, %v386
    %vm388 = vweird.f32 %v277
    %vm389 = vweird.f32 %v383
    %vm390 = vmor %vm388, %vm389
    %v391 = vsel %vm390, %v383, %v387
    %v392 = vand.u32 2147483647, %v277
    %vm393 = vcmp.eq.f32.partialorder %v392, 8.507059e+37
    %v394 = vand.u32 %v277, 2147483648
    %v395 = vor.u32 1.1754944e-38, %v394
    %v396 = vsel %vm393, %v395, %v391
    %v397 = vmul.f32 1.0, %v396
    %398 = vrot.lane.b32.xlu0 %v190, 9
    %v399 = vpop.permute.xlu0 %398
    %400 = vrot.lane.b32.xlu0 %v191, 9
    %v401 = vpop.permute.xlu0 %400
    %402 = vrot.lane.b32.xlu0 %v192, 9
    %v403 = vpop.permute.xlu0 %402
    %404 = vrot.lane.b32.xlu0 %v193, 9
    %v405 = vpop.permute.xlu0 %404
    %406 = vrot.lane.b32.xlu0 %v194, 9
    %v407 = vpop.permute.xlu0 %406
    %408 = vrot.lane.b32.xlu0 %v195, 9
    %v409 = vpop.permute.xlu0 %408
    %410 = vrot.lane.b32.xlu0 %v196, 9
    %v411 = vpop.permute.xlu0 %410
    %412 = vrot.lane.b32.xlu0 %v197, 9
    %v413 = vpop.permute.xlu0 %412
    %v422 = vmul.f32 %v292, %v399
    %v423 = vmul.f32 %v307, %v401
    %v424 = vmul.f32 %v322, %v403
    %v425 = vmul.f32 %v337, %v405
    %v426 = vmul.f32 %v352, %v407
    %v427 = vmul.f32 %v367, %v409
    %v428 = vmul.f32 %v382, %v411
    %v429 = vmul.f32 %v397, %v413
    %v430 = vadd.f32 %v422, 1e-08
    %v431 = vadd.f32 %v423, 1e-08
    %v432 = vadd.f32 %v424, 1e-08
    %v433 = vadd.f32 %v425, 1e-08
    %v434 = vadd.f32 %v426, 1e-08
    %v435 = vadd.f32 %v427, 1e-08
    %v436 = vadd.f32 %v428, 1e-08
    %v437 = vadd.f32 %v429, 1e-08
    %439 = vset.pattern.permute.xlu0 9
    %440 = vperm.xlu0 %439, %v430
    %v441 = vpop.permute.xlu0 %440
    %444 = vset.pattern.permute.xlu0 9
    %445 = vperm.xlu0 %444, %v431
    %v446 = vpop.permute.xlu0 %445
    %v448 = vmul.f32 %v441, %v238
    %v449 = vmul.f32 %v446, %v239
    %v450 = vadd.f32 %v448, 0.0
    %v451 = vadd.f32 %v449, 0.0
    %v452 = vadd.f32 %v430, 0.0
    %v453 = vadd.f32 %v431, 0.0
    %455 = vset.pattern.permute.xlu0 9
    %456 = vperm.xlu0 %455, %v432
    %v457 = vpop.permute.xlu0 %456
    %460 = vset.pattern.permute.xlu0 9
    %461 = vperm.xlu0 %460, %v433
    %v462 = vpop.permute.xlu0 %461
    %v464 = vmul.f32 %v457, %v240
    %v465 = vmul.f32 %v462, %v241
    %v466 = vadd.f32 %v450, %v464
    %v467 = vadd.f32 %v451, %v465
    %v468 = vadd.f32 %v452, %v432
    %v469 = vadd.f32 %v453, %v433
    %471 = vset.pattern.permute.xlu0 9
    %472 = vperm.xlu0 %471, %v434
    %v473 = vpop.permute.xlu0 %472
    %476 = vset.pattern.permute.xlu0 9
    %477 = vperm.xlu0 %476, %v435
    %v478 = vpop.permute.xlu0 %477
    %v480 = vmul.f32 %v473, %v242
    %v481 = vmul.f32 %v478, %v243
    %v482 = vadd.f32 %v466, %v480
    %v483 = vadd.f32 %v467, %v481
    %v484 = vadd.f32 %v468, %v434
    %v485 = vadd.f32 %v469, %v435
    %487 = vset.pattern.permute.xlu0 9
    %488 = vperm.xlu0 %487, %v436
    %v489 = vpop.permute.xlu0 %488
    %492 = vset.pattern.permute.xlu0 9
    %493 = vperm.xlu0 %492, %v437
    %v494 = vpop.permute.xlu0 %493
    %v496 = vmul.f32 %v489, %v244
    %v497 = vmul.f32 %v494, %v245
    %v498 = vadd.f32 %v482, %v496
    %v499 = vadd.f32 %v483, %v497
    %v500 = vadd.f32 %v484, %v436
    %v501 = vadd.f32 %v485, %v437
    %503 = vset.pattern.permute.xlu0 9
    %504 = vperm.xlu0 %503, %v500
    %v505 = vpop.permute.xlu0 %504
    %508 = vset.pattern.permute.xlu0 9
    %509 = vperm.xlu0 %508, %v501
    %v510 = vpop.permute.xlu0 %509
    %v512 = vrcp.pop %v505
    %v513 = vmul.f32 %v505, %v512
    %v514 = vsub.f32 1.0, %v513
    %v515 = vmul.f32 %v512, %v514
    %v516 = vadd.f32 %v512, %v515
    %vm517 = vweird.f32 %v505
    %vm518 = vweird.f32 %v512
    %vm519 = vmor %vm517, %vm518
    %v520 = vsel %vm519, %v512, %v516
    %v521 = vand.u32 2147483647, %v505
    %vm522 = vcmp.eq.f32.partialorder %v521, 8.507059e+37
    %v523 = vand.u32 %v505, 2147483648
    %v524 = vor.u32 1.1754944e-38, %v523
    %v525 = vsel %vm522, %v524, %v520
    %v526 = vmul.f32 %v498, %v525
    %v527 = vrcp.pop %v510
    %v528 = vmul.f32 %v510, %v527
    %v529 = vsub.f32 1.0, %v528
    %v530 = vmul.f32 %v527, %v529
    %v531 = vadd.f32 %v527, %v530
    %vm532 = vweird.f32 %v510
    %vm533 = vweird.f32 %v527
    %vm534 = vmor %vm532, %vm533
    %v535 = vsel %vm534, %v527, %v531
    %v536 = vand.u32 2147483647, %v510
    %vm537 = vcmp.eq.f32.partialorder %v536, 8.507059e+37
    %v538 = vand.u32 %v510, 2147483648
    %v539 = vor.u32 1.1754944e-38, %v538
    %v540 = vsel %vm537, %v539, %v535
    %v541 = vmul.f32 %v499, %v540
    %v542 = vld [vmem:[%s2] sm:$0xff]
    %v543 = vld [vmem:[%s2 + $0x8] sm:$0xff]
    %v544 = vxor.u32 %v526, 2147483648
    %v545 = vxor.u32 %v541, 2147483648
    %v546 = vmul.f32 %v544, 1.442695
    %v547 = vpow.pop %v546
    %v548 = vmul.f32 %v545, 1.442695
    %v549 = vpow.pop %v548
    %v550 = vadd.f32 %v547, 1.0
    %v551 = vadd.f32 %v549, 1.0
    %v552 = vrcp.pop %v550
    %v553 = vmul.f32 %v550, %v552
    %v554 = vsub.f32 1.0, %v553
    %v555 = vmul.f32 %v552, %v554
    %v556 = vadd.f32 %v552, %v555
    %vm557 = vweird.f32 %v550
    %vm558 = vweird.f32 %v552
    %vm559 = vmor %vm557, %vm558
    %v560 = vsel %vm559, %v552, %v556
    %v561 = vand.u32 2147483647, %v550
    %vm562 = vcmp.eq.f32.partialorder %v561, 8.507059e+37
    %v563 = vand.u32 %v550, 2147483648
    %v564 = vor.u32 1.1754944e-38, %v563
    %v565 = vsel %vm562, %v564, %v560
    %v566 = vmul.f32 1.0, %v565
    %v567 = vrcp.pop %v551
    %v568 = vmul.f32 %v551, %v567
    %v569 = vsub.f32 1.0, %v568
    %v570 = vmul.f32 %v567, %v569
    %v571 = vadd.f32 %v567, %v570
    %vm572 = vweird.f32 %v551
    %vm573 = vweird.f32 %v567
    %vm574 = vmor %vm572, %vm573
    %v575 = vsel %vm574, %v567, %v571
    %v576 = vand.u32 2147483647, %v551
    %vm577 = vcmp.eq.f32.partialorder %v576, 8.507059e+37
    %v578 = vand.u32 %v551, 2147483648
    %v579 = vor.u32 1.1754944e-38, %v578
    %v580 = vsel %vm577, %v579, %v575
    %v581 = vmul.f32 1.0, %v580
    %vm582 = vcmask 64512
    %v583 = vsel %vm582, %v526, %v566
    %v584 = vsel %vm582, %v541, %v581
    %586 = vset.pattern.permute.xlu0 0
    %587 = vperm.xlu0 %586, %v542
    %v588 = vpop.permute.xlu0 %587
    %591 = vset.pattern.permute.xlu0 0
    %592 = vperm.xlu0 %591, %v543
    %v593 = vpop.permute.xlu0 %592
    %v595 = vmul.f32 %v583, %v588
    %v596 = vmul.f32 %v584, %v593
    %v597 = vld [vmem:[%s3] sm:$0xff]
    %v598 = vld [vmem:[%s3 + $0x8] sm:$0xff]
    %v599 = vld [vmem:[%s4] sm:$0xff]
    %v600 = vld [vmem:[%s4 + $0x8] sm:$0xff]
    %v601 = vmul.f32 %v597, %v599
    %v602 = vmul.f32 %v598, %v600
    %vm603 = vcmask 39936
    %v604 = vsel %vm603, %v601, 0.0
    %605 = vadd.xlane.f32.xlu0 %v604
    %v606 = vpop.xlane.xlu0 %605
    %v607 = vsel %vm603, %v602, 0.0
    %608 = vadd.xlane.f32.xlu0 %v607
    %v609 = vpop.xlane.xlu0 %608
    %v610 = vlaneseq
    %v611 = vshrl.u32 %v610, 7
    %v612 = vadd.s32 %v611, 8
    %vm613 = vcmp.lt.s32.totalorder %v611, 0
    %v614 = vsub.s32 0, %v611
    %v615 = vsel %vm613, %v614, %v611
    %v616 = vshrl.u32 %v615, 3
    %v617 = vand.u32 %v615, 7
    %v618 = vsub.s32 0, %v617
    %v619 = vsel %vm613, %v618, %v617
    %vm620 = vcmp.lt.s32.totalorder %v612, 0
    %v621 = vsub.s32 0, %v612
    %v622 = vsel %vm620, %v621, %v612
    %v623 = vshrl.u32 %v622, 3
    %v624 = vand.u32 %v622, 7
    %v625 = vsub.s32 0, %v624
    %v626 = vsel %vm620, %v625, %v624
    %vm627 = vcmp.ne.s32.totalorder %v619, 0
    %vm628 = vcmp.ne.s32.totalorder %v626, 0
    %vm629 = vcmp.lt.s32.totalorder %v619, 0
    %vm630 = vcmp.lt.s32.totalorder %v626, 0
    %vm631 = vmand %vm629, %vm627
    %vm632 = vmand %vm630, %vm628
    %v633 = vadd.s32 %v619, 8
    %v634 = vadd.s32 %v626, 8
    %v635 = vsel %vm631, %v633, %v619
    %v636 = vsel %vm632, %v634, %v626
    %v637 = vrot.slane %v595, 6
    %v638 = vrot.slane %v596, 6
    %vm639 = vcmp.lt.s32.totalorder %v611, 2
    %v640 = vsel %vm639, %v637, %v638
    %v641 = vsel %vm639, %v638, %v637
    %v642 = vadd.s32 %v635, 4294967294
    %v643 = vadd.s32 %v636, 4294967294
    %vm644 = vcmp.ge.s32.totalorder %v642, 0
    %vm645 = vcmp.ge.s32.totalorder %v643, 0
    %vm646 = vcmp.lt.s32.totalorder %v642, 8
    %vm647 = vcmp.lt.s32.totalorder %v643, 8
    %vm648 = vmand %vm644, %vm646
    %vm649 = vmand %vm645, %vm647
    %v650 = vsel %vm648, 1, 0
    %v651 = vsel %vm649, 1, 0
    %vm652 = vcmp.eq.s32.totalorder %v650, 1
    %vm653 = vcmp.eq.s32.totalorder %v651, 1
    %v654 = vsel %vm652, %v641, 0.0
    %v655 = vsel %vm653, %v640, 0.0
    %658 = vrot.lane.b32.xlu0 %v654, 120
    %v659 = vpop.permute.xlu0 %658
    %660 = vrot.lane.b32.xlu0 %v655, 120
    %v661 = vpop.permute.xlu0 %660
    %v664 = vmul.f32 %v601, %v659
    %v665 = vmul.f32 %v602, %v661
    %v666 = vadd.f32 %v664, 1e-07
    %v667 = vadd.f32 %v665, 1e-07
    %669 = vset.pattern.permute.xlu0 0
    %670 = vperm.xlu0 %669, %v666
    %v671 = vpop.permute.xlu0 %670
    %674 = vset.pattern.permute.xlu0 0
    %675 = vperm.xlu0 %674, %v667
    %v676 = vpop.permute.xlu0 %675
    %v678 = vmul.f32 %v671, %v654
    %v679 = vmul.f32 %v676, %v655
    %v680 = vadd.f32 %v678, 0.0
    %v681 = vadd.f32 %v679, 0.0
    %v682 = vadd.f32 %v666, 0.0
    %v683 = vadd.f32 %v667, 0.0
    %v684 = vrot.slane %v595, 7
    %v685 = vrot.slane %v596, 7
    %vm686 = vcmp.lt.s32.totalorder %v611, 1
    %v687 = vsel %vm686, %v684, %v685
    %v688 = vsel %vm686, %v685, %v684
    %v689 = vadd.s32 %v635, 4294967295
    %v690 = vadd.s32 %v636, 4294967295
    %vm691 = vcmp.ge.s32.totalorder %v689, 0
    %vm692 = vcmp.ge.s32.totalorder %v690, 0
    %vm693 = vcmp.lt.s32.totalorder %v689, 8
    %vm694 = vcmp.lt.s32.totalorder %v690, 8
    %vm695 = vmand %vm691, %vm693
    %vm696 = vmand %vm692, %vm694
    %v697 = vsel %vm695, 1, 0
    %v698 = vsel %vm696, 1, 0
    %vm699 = vcmp.eq.s32.totalorder %v697, 1
    %vm700 = vcmp.eq.s32.totalorder %v698, 1
    %v701 = vsel %vm699, %v688, 0.0
    %v702 = vsel %vm700, %v687, 0.0
    %705 = vrot.lane.b32.xlu0 %v701, 121
    %v706 = vpop.permute.xlu0 %705
    %707 = vrot.lane.b32.xlu0 %v702, 121
    %v708 = vpop.permute.xlu0 %707
    %v711 = vmul.f32 %v601, %v706
    %v712 = vmul.f32 %v602, %v708
    %v713 = vadd.f32 %v711, 1e-07
    %v714 = vadd.f32 %v712, 1e-07
    %716 = vset.pattern.permute.xlu0 1
    %717 = vperm.xlu0 %716, %v713
    %v718 = vpop.permute.xlu0 %717
    %721 = vset.pattern.permute.xlu0 1
    %722 = vperm.xlu0 %721, %v714
    %v723 = vpop.permute.xlu0 %722
    %v725 = vmul.f32 %v718, %v701
    %v726 = vmul.f32 %v723, %v702
    %v727 = vadd.f32 %v680, %v725
    %v728 = vadd.f32 %v681, %v726
    %729 = vrot.lane.b32.xlu0 %v713, 127
    %v730 = vpop.permute.xlu0 %729
    %731 = vrot.lane.b32.xlu0 %v714, 127
    %v732 = vpop.permute.xlu0 %731
    %v735 = vadd.f32 %v682, %v730
    %v736 = vadd.f32 %v683, %v732
    %vm737 = vcmp.ge.s32.totalorder %v635, 0
    %vm738 = vcmp.ge.s32.totalorder %v636, 0
    %vm739 = vcmp.lt.s32.totalorder %v635, 8
    %vm740 = vcmp.lt.s32.totalorder %v636, 8
    %vm741 = vmand %vm737, %vm739
    %vm742 = vmand %vm738, %vm740
    %v743 = vsel %vm741, 1, 0
    %v744 = vsel %vm742, 1, 0
    %vm745 = vcmp.eq.s32.totalorder %v743, 1
    %vm746 = vcmp.eq.s32.totalorder %v744, 1
    %v747 = vsel %vm745, %v595, 0.0
    %v748 = vsel %vm746, %v596, 0.0
    %751 = vrot.lane.b32.xlu0 %v747, 122
    %v752 = vpop.permute.xlu0 %751
    %753 = vrot.lane.b32.xlu0 %v748, 122
    %v754 = vpop.permute.xlu0 %753
    %v757 = vmul.f32 %v601, %v752
    %v758 = vmul.f32 %v602, %v754
    %v759 = vadd.f32 %v757, 1e-07
    %v760 = vadd.f32 %v758, 1e-07
    %762 = vset.pattern.permute.xlu0 2
    %763 = vperm.xlu0 %762, %v759
    %v764 = vpop.permute.xlu0 %763
    %767 = vset.pattern.permute.xlu0 2
    %768 = vperm.xlu0 %767, %v760
    %v769 = vpop.permute.xlu0 %768
    %v771 = vmul.f32 %v764, %v747
    %v772 = vmul.f32 %v769, %v748
    %v773 = vadd.f32 %v727, %v771
    %v774 = vadd.f32 %v728, %v772
    %775 = vrot.lane.b32.xlu0 %v759, 126
    %v776 = vpop.permute.xlu0 %775
    %777 = vrot.lane.b32.xlu0 %v760, 126
    %v778 = vpop.permute.xlu0 %777
    %v781 = vadd.f32 %v735, %v776
    %v782 = vadd.f32 %v736, %v778
    %v783 = vrot.slane %v595, 1
    %v784 = vrot.slane %v596, 1
    %vm785 = vcmp.lt.s32.totalorder %v611, 7
    %v786 = vsel %vm785, %v783, %v784
    %v787 = vsel %vm785, %v784, %v783
    %v788 = vadd.s32 %v635, 1
    %v789 = vadd.s32 %v636, 1
    %vm790 = vcmp.ge.s32.totalorder %v788, 0
    %vm791 = vcmp.ge.s32.totalorder %v789, 0
    %vm792 = vcmp.lt.s32.totalorder %v788, 8
    %vm793 = vcmp.lt.s32.totalorder %v789, 8
    %vm794 = vmand %vm790, %vm792
    %vm795 = vmand %vm791, %vm793
    %v796 = vsel %vm794, 1, 0
    %v797 = vsel %vm795, 1, 0
    %vm798 = vcmp.eq.s32.totalorder %v796, 1
    %vm799 = vcmp.eq.s32.totalorder %v797, 1
    %v800 = vsel %vm798, %v786, 0.0
    %v801 = vsel %vm799, %v787, 0.0
    %804 = vrot.lane.b32.xlu0 %v800, 123
    %v805 = vpop.permute.xlu0 %804
    %806 = vrot.lane.b32.xlu0 %v801, 123
    %v807 = vpop.permute.xlu0 %806
    %v810 = vmul.f32 %v601, %v805
    %v811 = vmul.f32 %v602, %v807
    %v812 = vadd.f32 %v810, 1e-07
    %v813 = vadd.f32 %v811, 1e-07
    %815 = vset.pattern.permute.xlu0 3
    %816 = vperm.xlu0 %815, %v812
    %v817 = vpop.permute.xlu0 %816
    %820 = vset.pattern.permute.xlu0 3
    %821 = vperm.xlu0 %820, %v813
    %v822 = vpop.permute.xlu0 %821
    %v824 = vmul.f32 %v817, %v800
    %v825 = vmul.f32 %v822, %v801
    %v826 = vadd.f32 %v773, %v824
    %v827 = vadd.f32 %v774, %v825
    %828 = vrot.lane.b32.xlu0 %v812, 125
    %v829 = vpop.permute.xlu0 %828
    %830 = vrot.lane.b32.xlu0 %v813, 125
    %v831 = vpop.permute.xlu0 %830
    %v834 = vadd.f32 %v781, %v829
    %v835 = vadd.f32 %v782, %v831
    %v836 = vrot.slane %v595, 2
    %v837 = vrot.slane %v596, 2
    %vm838 = vcmp.lt.s32.totalorder %v611, 6
    %v839 = vsel %vm838, %v836, %v837
    %v840 = vsel %vm838, %v837, %v836
    %v841 = vadd.s32 %v635, 2
    %v842 = vadd.s32 %v636, 2
    %vm843 = vcmp.ge.s32.totalorder %v841, 0
    %vm844 = vcmp.ge.s32.totalorder %v842, 0
    %vm845 = vcmp.lt.s32.totalorder %v841, 8
    %vm846 = vcmp.lt.s32.totalorder %v842, 8
    %vm847 = vmand %vm843, %vm845
    %vm848 = vmand %vm844, %vm846
    %v849 = vsel %vm847, 1, 0
    %v850 = vsel %vm848, 1, 0
    %vm851 = vcmp.eq.s32.totalorder %v849, 1
    %vm852 = vcmp.eq.s32.totalorder %v850, 1
    %v853 = vsel %vm851, %v839, 0.0
    %v854 = vsel %vm852, %v840, 0.0
    %857 = vrot.lane.b32.xlu0 %v853, 124
    %v858 = vpop.permute.xlu0 %857
    %859 = vrot.lane.b32.xlu0 %v854, 124
    %v860 = vpop.permute.xlu0 %859
    %v863 = vmul.f32 %v601, %v858
    %v864 = vmul.f32 %v602, %v860
    %v865 = vadd.f32 %v863, 1e-07
    %v866 = vadd.f32 %v864, 1e-07
    %868 = vset.pattern.permute.xlu0 4
    %869 = vperm.xlu0 %868, %v865
    %v870 = vpop.permute.xlu0 %869
    %873 = vset.pattern.permute.xlu0 4
    %874 = vperm.xlu0 %873, %v866
    %v875 = vpop.permute.xlu0 %874
    %v877 = vmul.f32 %v870, %v853
    %v878 = vmul.f32 %v875, %v854
    %v879 = vadd.f32 %v826, %v877
    %v880 = vadd.f32 %v827, %v878
    %881 = vrot.lane.b32.xlu0 %v865, 124
    %v882 = vpop.permute.xlu0 %881
    %883 = vrot.lane.b32.xlu0 %v866, 124
    %v884 = vpop.permute.xlu0 %883
    %v887 = vadd.f32 %v834, %v882
    %v888 = vadd.f32 %v835, %v884
    %v889 = vrcp.pop %v887
    %v890 = vrcp.pop %v888
    %892 = vset.pattern.permute.xlu0 0
    %893 = vperm.xlu0 %892, %v889
    %v894 = vpop.permute.xlu0 %893
    %897 = vset.pattern.permute.xlu0 0
    %898 = vperm.xlu0 %897, %v890
    %v899 = vpop.permute.xlu0 %898
    %v901 = vmul.f32 %v879, %v894
    %v902 = vmul.f32 %v880, %v899
    %v903 = vmul.f32 %v901, %v588
    %v904 = vmul.f32 %v902, %v593
    %907 = vrot.lane.b32.xlu0 %v601, 8
    %v908 = vpop.permute.xlu0 %907
    %909 = vrot.lane.b32.xlu0 %v602, 8
    %v910 = vpop.permute.xlu0 %909
    %913 = vrot.lane.b32.xlu0 %v654, 14
    %v914 = vpop.permute.xlu0 %913
    %915 = vrot.lane.b32.xlu0 %v655, 14
    %v916 = vpop.permute.xlu0 %915
    %919 = vrot.lane.b32.xlu0 %v701, 22
    %v920 = vpop.permute.xlu0 %919
    %921 = vrot.lane.b32.xlu0 %v702, 22
    %v922 = vpop.permute.xlu0 %921
    %925 = vrot.lane.b32.xlu0 %v747, 30
    %v926 = vpop.permute.xlu0 %925
    %927 = vrot.lane.b32.xlu0 %v748, 30
    %v928 = vpop.permute.xlu0 %927
    %931 = vrot.lane.b32.xlu0 %v800, 38
    %v932 = vpop.permute.xlu0 %931
    %933 = vrot.lane.b32.xlu0 %v801, 38
    %v934 = vpop.permute.xlu0 %933
    %937 = vrot.lane.b32.xlu0 %v853, 46
    %v938 = vpop.permute.xlu0 %937
    %939 = vrot.lane.b32.xlu0 %v854, 46
    %v940 = vpop.permute.xlu0 %939
    %v943 = vsel %vm582, %v903, %v908
    %v944 = vsel %vm582, %v904, %v910
    %vm945 = vcmask 105472
    %v946 = vsel %vm945, %v943, %v606
    %v947 = vsel %vm945, %v944, %v609
    %vm948 = vcmask 113664
    %v949 = vsel %vm948, %v946, %v914
    %v950 = vsel %vm948, %v947, %v916
    %vm951 = vcmask 179200
    %v952 = vsel %vm951, %v949, %v920
    %v953 = vsel %vm951, %v950, %v922
    %vm954 = vcmask 244736
    %v955 = vsel %vm954, %v952, %v926
    %v956 = vsel %vm954, %v953, %v928
    %vm957 = vcmask 310272
    %v958 = vsel %vm957, %v955, %v932
    %v959 = vsel %vm957, %v956, %v934
    %vm960 = vcmask 375808
    %v961 = vsel %vm960, %v958, %v938
    %v962 = vsel %vm960, %v959, %v940
    %vm963 = vcmask 441344
    %v964 = vsel %vm963, %v961, 0.0
    %v965 = vsel %vm963, %v962, 0.0
    %966 = vst [vmem:[#allocation2] sm:$0xff] %v964
    %967 = vst [vmem:[#allocation2 + $0x8] sm:$0xff] %v965
    // Predicated region
    $region38: #{tpu_custom_call.1} parent=1 // pred_check
      _
    $region39: #{tpu_custom_call.1} parent=1 // pred_check_branch
      %969 = sbr.rel (0) target = $region41
    $region40: #{tpu_custom_call.1} parent=1 // pred_region
      %971 = vsyncadd [#allocation3], 0
      %s972 = sshll.u32 [#allocation2], 4
      %s973 = int_to_ptr.vmem [resolvable:$true] %s972
      %s974 = sshll.u32 %s9, 4
      %s975 = int_to_ptr.hbm [resolvable:$true] %s974
      %980 = dma.vmem_to_hbm [thread:$0]  %s973, 256, %s975, [#allocation3], 128, 128, 8
    $region41: #{tpu_custom_call.1} parent=1 // pred_fallthru
      _
    // Predicated region
    $region42: #{tpu_custom_call.1} parent=1 // pred_check
      _
    $region43: #{tpu_custom_call.1} parent=1 // pred_check_branch
      %982 = sbr.rel (0) target = $region45
    $region44: #{tpu_custom_call.1} parent=1 // pred_region
      %984 = dma.done [#allocation3], 256
    $region45: #{tpu_custom_call.1} parent=1 // pred_fallthru
      _
    %985 = vsyncpa [#allocation3], 1

</llo_original>
